<compile_context>
chip_gen: v5e
topology: v5e:2x2
jax: 0.10.0
libtpu: 0.0.40
codegen_flags: <defaults>
</compile_context>

<pallas_src>
import jax
import jax.numpy as jnp
from jax.experimental import pallas as pl
from jax.experimental.pallas import tpu as pltpu

LN_EPS = 1e-5  # PyTorch nn.LayerNorm default


def _layernorm(h, gamma, beta):
    """One-pass LayerNorm: var = E[h^2] - E[h]^2 (independent XLU reductions)."""
    n = h.shape[-1]
    inv_n = 1.0 / n
    s = jnp.sum(h, axis=-1, keepdims=True)
    s2 = jnp.sum(h * h, axis=-1, keepdims=True)
    mu = s * inv_n
    var = jnp.maximum(s2 * inv_n - mu * mu, 0.0)
    inv = jax.lax.rsqrt(var + LN_EPS)
    return (h - mu) * inv * gamma + beta


def hybrid_dqn_kernel(x_ref, w1_ref, w2_ref, wh1_ref, wq_ref, vec_ref, out_ref):
    # in-kernel cast to bf16 (VPU work hidden under the matmuls)
    x = x_ref[...].astype(jnp.bfloat16)                      # (TB, IN)

    # packed vector params (f32), single (8, 256) slab
    b1, g1, be1 = vec_ref[0:1, :], vec_ref[1:2, :], vec_ref[2:3, :]
    b2, g2, be2 = vec_ref[3:4, 0:128], vec_ref[4:5, 0:128], vec_ref[5:6, 0:128]
    bh1 = vec_ref[6:7, 0:128]
    out_w = out_ref.shape[-1]
    bq = vec_ref[7:8, 0:out_w]

    # feature[0:3]: Linear(input_dim, 256) -> ReLU -> LayerNorm(256)
    h1 = jnp.dot(x, w1_ref[...], preferred_element_type=jnp.float32) + b1
    h1 = _layernorm(jnp.maximum(h1, 0.0), g1, be1)

    # feature[3]: Dropout(0.2) -- identity in eval mode
    # TODO(synk): training-mode dropout (random mask + 1/0.8 scaling) not implemented.

    # feature[4:7]: Linear(256, 128) -> ReLU -> LayerNorm(128)
    h2 = jnp.dot(h1.astype(jnp.bfloat16), w2_ref[...],
                 preferred_element_type=jnp.float32) + b2
    h2 = _layernorm(jnp.maximum(h2, 0.0), g2, be2)

    # fused head first layers: [value_hidden | adv_hidden] = h2 @ [wv1 | wa1]
    hh = jnp.dot(h2.astype(jnp.bfloat16), wh1_ref[...],
                 preferred_element_type=jnp.float32) + bh1
    hh = jnp.maximum(hh, 0.0)                                 # (TB, 128)

    # final head GEMM: dueling combine already folded into wq / bq at pack time,
    # so the MXU output feeds the store directly.
    out_ref[...] = jnp.dot(hh.astype(jnp.bfloat16), wq_ref[...],
                           preferred_element_type=jnp.float32) + bq


def _pick_tb(B, preferred_tb=1024):
    """Batch tile: large (amortize ~0.35us/grid-step), >=2 grid steps when the
    batch allows it (v7x megacore), multiple of 8 sublanes (spec-legal)."""
    if B > preferred_tb:
        return preferred_tb
    if B >= 16:
        tb = (B + 1) // 2
        return ((tb + 7) // 8) * 8          # round up to a multiple of 8
    return B                                 # tiny batch: single full-batch block


def hybrid_dqn_forward(x, kp, *, preferred_tb=1024):
    """x: (B, input_dim) f32; kp: packed kernel params (see pack_kernel_params)."""
    B, IN = x.shape
    A = kp["out_dim"]
    OUT_W = kp["wq"].shape[1]               # == A, or 128 for lane-dense output

    TB = _pick_tb(B, preferred_tb)
    grid = (pl.cdiv(B, TB),)

    weights = (kp["w1"], kp["w2"], kp["wh1"], kp["wq"], kp["vec"])

    def const_spec(arr):
        # full-array block, constant index map -> VMEM-resident across grid steps
        return pl.BlockSpec(arr.shape, lambda i: (0, 0))

    flops = 2 * B * (IN * 256 + 256 * 128 + 128 * 128 + 128 * OUT_W)
    bytes_accessed = (
        B * IN * 4 + B * OUT_W * 4
        + sum(int(w.size) * w.dtype.itemsize for w in weights)
    )

    out = pl.pallas_call(
        hybrid_dqn_kernel,
        out_shape=jax.ShapeDtypeStruct((B, OUT_W), jnp.float32),
        grid=grid,
        in_specs=[pl.BlockSpec((TB, IN), lambda i: (i, 0))]
                 + [const_spec(w) for w in weights],
        out_specs=pl.BlockSpec((TB, OUT_W), lambda i: (i, 0)),
        compiler_params=pltpu.CompilerParams(
            dimension_semantics=("parallel",),
            vmem_limit_bytes=32 * 1024 * 1024),   # explicit; safe on v5e/v6e/v7x
        cost_estimate=pl.CostEstimate(
            flops=flops, transcendentals=2 * B, bytes_accessed=bytes_accessed),
    )(x, *weights)

    return out[:, :A] if OUT_W != A else out


def init_params(key, input_dim, output_dim):
    """Deterministic synthetic parameters (PyTorch-style, pre-transposed, f32)."""
    ks = jax.random.split(key, 12)

    def lin(kw, kb, fan_in, fan_out):
        bound = 1.0 / jnp.sqrt(fan_in)
        w = jax.random.uniform(kw, (fan_in, fan_out), jnp.float32, -bound, bound)
        b = jax.random.uniform(kb, (1, fan_out), jnp.float32, -bound, bound)
        return w, b

    w1, b1 = lin(ks[0], ks[1], input_dim, 256)
    w2, b2 = lin(ks[2], ks[3], 256, 128)
    wv1, bv1 = lin(ks[4], ks[5], 128, 64)
    wv2, bv2 = lin(ks[6], ks[7], 64, 1)
    wa1, ba1 = lin(ks[8], ks[9], 128, 64)
    wa2, ba2 = lin(ks[10], ks[11], 64, output_dim)

    return dict(
        w1=w1, b1=b1,
        g1=jnp.ones((1, 256), jnp.float32), be1=jnp.zeros((1, 256), jnp.float32),
        w2=w2, b2=b2,
        g2=jnp.ones((1, 128), jnp.float32), be2=jnp.zeros((1, 128), jnp.float32),
        wv1=wv1, bv1=bv1, wv2=wv2, bv2=bv2,
        wa1=wa1, ba1=ba1, wa2=wa2, ba2=ba2,
    )


def pack_kernel_params(p, output_dim, lane_dense_out=False):
    """Fuse head weights, fold the dueling combine into the final GEMM, and
    pack all small vectors into one (8, 256) f32 slab."""
    A = output_dim
    out_w = 128 if lane_dense_out else A

    # fused head layer 1: [wv1 | wa1] -> (128, 128)
    wh1 = jnp.concatenate([p["wv1"], p["wa1"]], axis=1)
    bh1 = jnp.concatenate([p["bv1"], p["ba1"]], axis=1)            # (1, 128)

    # fold dueling combine (Q[:, j] = V + A_j - mean_k A_k) into weights/bias:
    wa2c = p["wa2"] - jnp.mean(p["wa2"], axis=1, keepdims=True)    # (64, A)
    ba2c = p["ba2"] - jnp.mean(p["ba2"], axis=1, keepdims=True)    # (1, A)
    wq = jnp.zeros((128, out_w), jnp.float32)
    wq = wq.at[0:64, 0:A].set(jnp.broadcast_to(p["wv2"], (64, A)))  # value rows
    wq = wq.at[64:128, 0:A].set(wa2c)                               # advantage rows
    bq = jnp.zeros((1, 128), jnp.float32)
    bq = bq.at[:, 0:A].set(p["bv2"] + ba2c)

    def pad256(v):
        return jnp.pad(v, ((0, 0), (0, 256 - v.shape[1])))

    vec = jnp.concatenate([
        p["b1"], p["g1"], p["be1"],                                 # rows 0..2 (256)
        pad256(p["b2"]), pad256(p["g2"]), pad256(p["be2"]),         # rows 3..5 (128|pad)
        pad256(bh1), pad256(bq),                                    # rows 6..7
    ], axis=0)                                                      # (8, 256) f32

    return dict(
        w1=p["w1"].astype(jnp.bfloat16),
        w2=p["w2"].astype(jnp.bfloat16),
        wh1=wh1.astype(jnp.bfloat16),
        wq=wq.astype(jnp.bfloat16),
        vec=vec,
        out_dim=A,
    )


def reference_forward(x, p):
    """Pure-JAX f32 reference (eval-mode Hybrid_DQN.forward) for verification."""
    def ln(h, g, b):
        mu = jnp.mean(h, axis=-1, keepdims=True)
        var = jnp.mean((h - mu) ** 2, axis=-1, keepdims=True)
        return (h - mu) / jnp.sqrt(var + LN_EPS) * g + b

    h = jnp.maximum(x @ p["w1"] + p["b1"], 0.0)
    h = ln(h, p["g1"], p["be1"])
    h = jnp.maximum(h @ p["w2"] + p["b2"], 0.0)
    h = ln(h, p["g2"], p["be2"])
    v = jnp.maximum(h @ p["wv1"] + p["bv1"], 0.0) @ p["wv2"] + p["bv2"]
    a = jnp.maximum(h @ p["wa1"] + p["ba1"], 0.0) @ p["wa2"] + p["ba2"]
    return v + a - jnp.mean(a, axis=1, keepdims=True)


if __name__ == "__main__":
    B, INPUT_DIM, OUTPUT_DIM = 8, 32, 4

    key = jax.random.PRNGKey(0)
    kx, kparam = jax.random.split(key)
    x = jax.random.normal(kx, (B, INPUT_DIM), jnp.float32)
    params = init_params(kparam, INPUT_DIM, OUTPUT_DIM)
    q_ref = reference_forward(x, params)

    # default (narrow) output path
    kp = pack_kernel_params(params, OUTPUT_DIM, lane_dense_out=False)
    q = jax.block_until_ready(hybrid_dqn_forward(x, kp))
    assert q.shape == (B, OUTPUT_DIM)
    # bf16 matmul inputs with f32 accumulation -> relaxed tolerance vs f32 reference.
    assert jnp.allclose(q, q_ref, atol=5e-2, rtol=5e-2), "mismatch (narrow output)"

    # lane-dense output path (store-bound / v5e lever)
    kp_ld = pack_kernel_params(params, OUTPUT_DIM, lane_dense_out=True)
    q_ld = jax.block_until_ready(hybrid_dqn_forward(x, kp_ld))
    assert q_ld.shape == (B, OUTPUT_DIM)
    assert jnp.allclose(q_ld, q_ref, atol=5e-2, rtol=5e-2), "mismatch (lane-dense output)"

    print("KERNEL_OK")
</pallas_src>

<mosaic_0001>
module attributes {stable_mosaic.version = 11 : i64} {
  func.func @hybrid_dqn_kernel(%arg0: i32, %arg1: memref<8x32xf32, #tpu.memory_space<vmem>>, %arg2: memref<32x256xbf16, #tpu.memory_space<vmem>>, %arg3: memref<256x128xbf16, #tpu.memory_space<vmem>>, %arg4: memref<128x128xbf16, #tpu.memory_space<vmem>>, %arg5: memref<128x4xbf16, #tpu.memory_space<vmem>>, %arg6: memref<8x256xf32, #tpu.memory_space<vmem>>, %arg7: memref<8x4xf32, #tpu.memory_space<vmem>>) attributes {dimension_semantics = [#tpu.dimension_semantics<parallel>], iteration_bounds = array<i64: 1>, scalar_prefetch = 0 : i64, scratch_operands = 0 : i64, tpu.core_type = #tpu.core_type<tc>, window_params = [{transform_indices = @transform_0, window_bounds = array<i64: 8, 32>}, {pipeline_mode = #tpu.pipeline_mode<synchronous>, transform_indices = @transform_1, window_bounds = array<i64: 32, 256>}, {pipeline_mode = #tpu.pipeline_mode<synchronous>, transform_indices = @transform_2, window_bounds = array<i64: 256, 128>}, {pipeline_mode = #tpu.pipeline_mode<synchronous>, transform_indices = @transform_3, window_bounds = array<i64: 128, 128>}, {pipeline_mode = #tpu.pipeline_mode<synchronous>, transform_indices = @transform_4, window_bounds = array<i64: 128, 4>}, {pipeline_mode = #tpu.pipeline_mode<synchronous>, transform_indices = @transform_5, window_bounds = array<i64: 8, 256>}, {transform_indices = @transform_6, window_bounds = array<i64: 8, 4>}]} {
    %c0 = arith.constant 0 : index
    %c0_0 = arith.constant 0 : index
    %0 = vector.load %arg1[%c0, %c0_0] : memref<8x32xf32, #tpu.memory_space<vmem>>, vector<8x32xf32>
    %1 = arith.truncf %0 : vector<8x32xf32> to vector<8x32xbf16>
    %c0_1 = arith.constant 0 : index
    %c0_2 = arith.constant 0 : index
    %2 = vector.load %arg6[%c0_1, %c0_2] : memref<8x256xf32, #tpu.memory_space<vmem>>, vector<1x256xf32>
    %c1 = arith.constant 1 : index
    %c0_3 = arith.constant 0 : index
    %3 = vector.load %arg6[%c1, %c0_3] : memref<8x256xf32, #tpu.memory_space<vmem>>, vector<1x256xf32>
    %c2 = arith.constant 2 : index
    %c0_4 = arith.constant 0 : index
    %4 = vector.load %arg6[%c2, %c0_4] : memref<8x256xf32, #tpu.memory_space<vmem>>, vector<1x256xf32>
    %c3 = arith.constant 3 : index
    %c0_5 = arith.constant 0 : index
    %5 = vector.load %arg6[%c3, %c0_5] : memref<8x256xf32, #tpu.memory_space<vmem>>, vector<1x128xf32>
    %c4 = arith.constant 4 : index
    %c0_6 = arith.constant 0 : index
    %6 = vector.load %arg6[%c4, %c0_6] : memref<8x256xf32, #tpu.memory_space<vmem>>, vector<1x128xf32>
    %c5 = arith.constant 5 : index
    %c0_7 = arith.constant 0 : index
    %7 = vector.load %arg6[%c5, %c0_7] : memref<8x256xf32, #tpu.memory_space<vmem>>, vector<1x128xf32>
    %c6 = arith.constant 6 : index
    %c0_8 = arith.constant 0 : index
    %8 = vector.load %arg6[%c6, %c0_8] : memref<8x256xf32, #tpu.memory_space<vmem>>, vector<1x128xf32>
    %c7 = arith.constant 7 : index
    %c0_9 = arith.constant 0 : index
    %9 = vector.load %arg6[%c7, %c0_9] : memref<8x256xf32, #tpu.memory_space<vmem>>, vector<1x4xf32>
    %c0_10 = arith.constant 0 : index
    %c0_11 = arith.constant 0 : index
    %10 = vector.load %arg2[%c0_10, %c0_11] : memref<32x256xbf16, #tpu.memory_space<vmem>>, vector<32x256xbf16>
    %cst = arith.constant dense<0.000000e+00> : vector<8x256xf32>
    %11 = tpu.matmul %1, %10, %cst {dimension_numbers = #tpu.dot_dimension_numbers<[1], [0], [0], [1], [0, 0, 1, 1], [], []>} : vector<8x32xbf16>, vector<32x256xbf16>, vector<8x256xf32> -> vector<8x256xf32>
    %12 = vector.broadcast %2 : vector<1x256xf32> to vector<8x256xf32>
    %13 = arith.addf %11, %12 : vector<8x256xf32>
    %cst_12 = arith.constant 0.000000e+00 : f32
    %14 = vector.broadcast %cst_12 : f32 to vector<8x256xf32>
    %15 = arith.maximumf %13, %14 : vector<8x256xf32>
    %cst_13 = arith.constant dense<0.000000e+00> : vector<8xf32>
    %16 = vector.multi_reduction <add>, %15, %cst_13 [1] : vector<8x256xf32> to vector<8xf32>
    %17 = vector.shape_cast %16 : vector<8xf32> to vector<8x1xf32>
    %18 = arith.mulf %15, %15 : vector<8x256xf32>
    %cst_14 = arith.constant dense<0.000000e+00> : vector<8xf32>
    %19 = vector.multi_reduction <add>, %18, %cst_14 [1] : vector<8x256xf32> to vector<8xf32>
    %20 = vector.shape_cast %19 : vector<8xf32> to vector<8x1xf32>
    %cst_15 = arith.constant 3.906250e-03 : f32
    %21 = vector.broadcast %cst_15 : f32 to vector<8x1xf32>
    %22 = arith.mulf %17, %21 : vector<8x1xf32>
    %cst_16 = arith.constant 3.906250e-03 : f32
    %23 = vector.broadcast %cst_16 : f32 to vector<8x1xf32>
    %24 = arith.mulf %20, %23 : vector<8x1xf32>
    %25 = arith.mulf %22, %22 : vector<8x1xf32>
    %26 = arith.subf %24, %25 : vector<8x1xf32>
    %cst_17 = arith.constant 0.000000e+00 : f32
    %27 = vector.broadcast %cst_17 : f32 to vector<8x1xf32>
    %28 = arith.maximumf %26, %27 : vector<8x1xf32>
    %cst_18 = arith.constant 9.99999974E-6 : f32
    %29 = vector.broadcast %cst_18 : f32 to vector<8x1xf32>
    %30 = arith.addf %28, %29 : vector<8x1xf32>
    %31 = math.rsqrt %30 : vector<8x1xf32>
    %32 = vector.broadcast %22 : vector<8x1xf32> to vector<8x256xf32>
    %33 = arith.subf %15, %32 : vector<8x256xf32>
    %34 = vector.broadcast %31 : vector<8x1xf32> to vector<8x256xf32>
    %35 = arith.mulf %33, %34 : vector<8x256xf32>
    %36 = vector.broadcast %3 : vector<1x256xf32> to vector<8x256xf32>
    %37 = arith.mulf %35, %36 : vector<8x256xf32>
    %38 = vector.broadcast %4 : vector<1x256xf32> to vector<8x256xf32>
    %39 = arith.addf %37, %38 : vector<8x256xf32>
    %40 = arith.truncf %39 : vector<8x256xf32> to vector<8x256xbf16>
    %c0_19 = arith.constant 0 : index
    %c0_20 = arith.constant 0 : index
    %41 = vector.load %arg3[%c0_19, %c0_20] : memref<256x128xbf16, #tpu.memory_space<vmem>>, vector<256x128xbf16>
    %cst_21 = arith.constant dense<0.000000e+00> : vector<8x128xf32>
    %42 = tpu.matmul %40, %41, %cst_21 {dimension_numbers = #tpu.dot_dimension_numbers<[1], [0], [0], [1], [0, 0, 1, 1], [], []>} : vector<8x256xbf16>, vector<256x128xbf16>, vector<8x128xf32> -> vector<8x128xf32>
    %43 = vector.broadcast %5 : vector<1x128xf32> to vector<8x128xf32>
    %44 = arith.addf %42, %43 : vector<8x128xf32>
    %cst_22 = arith.constant 0.000000e+00 : f32
    %45 = vector.broadcast %cst_22 : f32 to vector<8x128xf32>
    %46 = arith.maximumf %44, %45 : vector<8x128xf32>
    %cst_23 = arith.constant dense<0.000000e+00> : vector<8xf32>
    %47 = vector.multi_reduction <add>, %46, %cst_23 [1] : vector<8x128xf32> to vector<8xf32>
    %48 = vector.shape_cast %47 : vector<8xf32> to vector<8x1xf32>
    %49 = arith.mulf %46, %46 : vector<8x128xf32>
    %cst_24 = arith.constant dense<0.000000e+00> : vector<8xf32>
    %50 = vector.multi_reduction <add>, %49, %cst_24 [1] : vector<8x128xf32> to vector<8xf32>
    %51 = vector.shape_cast %50 : vector<8xf32> to vector<8x1xf32>
    %cst_25 = arith.constant 7.812500e-03 : f32
    %52 = vector.broadcast %cst_25 : f32 to vector<8x1xf32>
    %53 = arith.mulf %48, %52 : vector<8x1xf32>
    %cst_26 = arith.constant 7.812500e-03 : f32
    %54 = vector.broadcast %cst_26 : f32 to vector<8x1xf32>
    %55 = arith.mulf %51, %54 : vector<8x1xf32>
    %56 = arith.mulf %53, %53 : vector<8x1xf32>
    %57 = arith.subf %55, %56 : vector<8x1xf32>
    %cst_27 = arith.constant 0.000000e+00 : f32
    %58 = vector.broadcast %cst_27 : f32 to vector<8x1xf32>
    %59 = arith.maximumf %57, %58 : vector<8x1xf32>
    %cst_28 = arith.constant 9.99999974E-6 : f32
    %60 = vector.broadcast %cst_28 : f32 to vector<8x1xf32>
    %61 = arith.addf %59, %60 : vector<8x1xf32>
    %62 = math.rsqrt %61 : vector<8x1xf32>
    %63 = vector.broadcast %53 : vector<8x1xf32> to vector<8x128xf32>
    %64 = arith.subf %46, %63 : vector<8x128xf32>
    %65 = vector.broadcast %62 : vector<8x1xf32> to vector<8x128xf32>
    %66 = arith.mulf %64, %65 : vector<8x128xf32>
    %67 = vector.broadcast %6 : vector<1x128xf32> to vector<8x128xf32>
    %68 = arith.mulf %66, %67 : vector<8x128xf32>
    %69 = vector.broadcast %7 : vector<1x128xf32> to vector<8x128xf32>
    %70 = arith.addf %68, %69 : vector<8x128xf32>
    %71 = arith.truncf %70 : vector<8x128xf32> to vector<8x128xbf16>
    %c0_29 = arith.constant 0 : index
    %c0_30 = arith.constant 0 : index
    %72 = vector.load %arg4[%c0_29, %c0_30] : memref<128x128xbf16, #tpu.memory_space<vmem>>, vector<128x128xbf16>
    %cst_31 = arith.constant dense<0.000000e+00> : vector<8x128xf32>
    %73 = tpu.matmul %71, %72, %cst_31 {dimension_numbers = #tpu.dot_dimension_numbers<[1], [0], [0], [1], [0, 0, 1, 1], [], []>} : vector<8x128xbf16>, vector<128x128xbf16>, vector<8x128xf32> -> vector<8x128xf32>
    %74 = vector.broadcast %8 : vector<1x128xf32> to vector<8x128xf32>
    %75 = arith.addf %73, %74 : vector<8x128xf32>
    %cst_32 = arith.constant 0.000000e+00 : f32
    %76 = vector.broadcast %cst_32 : f32 to vector<8x128xf32>
    %77 = arith.maximumf %75, %76 : vector<8x128xf32>
    %78 = arith.truncf %77 : vector<8x128xf32> to vector<8x128xbf16>
    %c0_33 = arith.constant 0 : index
    %c0_34 = arith.constant 0 : index
    %79 = vector.load %arg5[%c0_33, %c0_34] : memref<128x4xbf16, #tpu.memory_space<vmem>>, vector<128x4xbf16>
    %cst_35 = arith.constant dense<0.000000e+00> : vector<8x4xf32>
    %80 = tpu.matmul %78, %79, %cst_35 {dimension_numbers = #tpu.dot_dimension_numbers<[1], [0], [0], [1], [0, 0, 1, 1], [], []>} : vector<8x128xbf16>, vector<128x4xbf16>, vector<8x4xf32> -> vector<8x4xf32>
    %81 = vector.broadcast %9 : vector<1x4xf32> to vector<8x4xf32>
    %82 = arith.addf %80, %81 : vector<8x4xf32>
    %c0_36 = arith.constant 0 : index
    %c0_37 = arith.constant 0 : index
    %83 = vector.load %arg7[%c0_36, %c0_37] : memref<8x4xf32, #tpu.memory_space<vmem>>, vector<8x4xf32>
    tpu.vector_store %arg7[%c0_36, %c0_37], %82 {strides = array<i32>} : memref<8x4xf32, #tpu.memory_space<vmem>>, vector<8x4xf32>,
    return
  }
  func.func @transform_0(%arg0: i32) -> (i32, i32) {
    %c0_i32 = arith.constant 0 : i32
    %c0_i32_0 = arith.constant 0 : i32
    return %arg0, %c0_i32 : i32, i32
  }
  func.func @transform_1(%arg0: i32) -> (i32, i32) {
    %c0_i32 = arith.constant 0 : i32
    %c0_i32_0 = arith.constant 0 : i32
    %c0_i32_1 = arith.constant 0 : i32
    return %c0_i32, %c0_i32_0 : i32, i32
  }
  func.func @transform_2(%arg0: i32) -> (i32, i32) {
    %c0_i32 = arith.constant 0 : i32
    %c0_i32_0 = arith.constant 0 : i32
    %c0_i32_1 = arith.constant 0 : i32
    return %c0_i32, %c0_i32_0 : i32, i32
  }
  func.func @transform_3(%arg0: i32) -> (i32, i32) {
    %c0_i32 = arith.constant 0 : i32
    %c0_i32_0 = arith.constant 0 : i32
    %c0_i32_1 = arith.constant 0 : i32
    return %c0_i32, %c0_i32_0 : i32, i32
  }
  func.func @transform_4(%arg0: i32) -> (i32, i32) {
    %c0_i32 = arith.constant 0 : i32
    %c0_i32_0 = arith.constant 0 : i32
    %c0_i32_1 = arith.constant 0 : i32
    return %c0_i32, %c0_i32_0 : i32, i32
  }
  func.func @transform_5(%arg0: i32) -> (i32, i32) {
    %c0_i32 = arith.constant 0 : i32
    %c0_i32_0 = arith.constant 0 : i32
    %c0_i32_1 = arith.constant 0 : i32
    return %c0_i32, %c0_i32_0 : i32, i32
  }
  func.func @transform_6(%arg0: i32) -> (i32, i32) {
    %c0_i32 = arith.constant 0 : i32
    %c0_i32_0 = arith.constant 0 : i32
    return %arg0, %c0_i32 : i32, i32
  }
}

</mosaic_0001>

<llo_original>
// kernel: tpu_custom_call.1
$region0: #{tpu_custom_call.1}
  #allocation0 [shape = 'u32[]', space=smem, size = 0x4, offset = 0x4, fixed_abs, tag = 'smem constant byte address 0x4 - core index']
  #allocation1 [shape = 'u32[72,128]{1,0:T(1,128)}', space=vmem, size = 0x9000, scoped, tag = 'internal scratch']
  %s0 = inlined_call_operand.hbm [shape: f32[8,32], index: 0, kind: input, shape index: {}]
  %s1 = inlined_call_operand.hbm [shape: bf16[32,256], index: 1, kind: input, shape index: {}]
  %s2 = inlined_call_operand.hbm [shape: bf16[256,128], index: 2, kind: input, shape index: {}]
  %s3 = inlined_call_operand.vmem [shape: bf16[128,128], index: 3, kind: input, shape index: {}]
  %s4 = inlined_call_operand.vmem [shape: bf16[128,4], index: 4, kind: input, shape index: {}]
  %s5 = inlined_call_operand.hbm [shape: f32[8,256], index: 5, kind: input, shape index: {}]
  %s6 = inlined_call_operand.vmem [shape: f32[8,4], index: 6, kind: output, shape index: {}]
  %s7 = sld [smem:[#allocation0]]
  $region50: #{tpu_custom_call.1} parent=0
    _
  %s9 = ssub.s32 1, %s7
  %s10 = scalar_select 0, %s9, %s7
  $region1: #{tpu_custom_call.1} parent=0
    #allocation2 [shape = 'u8[4096]{0}', space=vmem, size = 0x1000, scoped, tag = 'input window, operand 0, single buffered']
    #allocation3 [shape = 's32[1]{0}', space=sflag, size = 0x4, scoped, tag = 'scoped memory for tpu_custom_call.1']
    #allocation4 [shape = 'u8[16384]{0}', space=vmem, size = 0x4000, scoped, tag = 'input window, operand 1, single buffered']
    #allocation5 [shape = 's32[1]{0}', space=sflag, size = 0x4, scoped, tag = 'scoped memory for tpu_custom_call.1']
    #allocation6 [shape = 'u8[65536]{0}', space=vmem, size = 0x10000, scoped, tag = 'input window, operand 2, single buffered']
    #allocation7 [shape = 'u8[8192]{0}', space=vmem, size = 0x2000, scoped, tag = 'input window, operand 5, single buffered']
    #allocation8 [shape = 's32[1]{0}', space=sflag, size = 0x4, scoped, tag = 'scoped memory for tpu_custom_call.1']
    %11 = vsyncpa [#allocation3], 0
    %12 = vsyncpa [#allocation5], 0
    %13 = vsyncpa [#allocation8], 0
    // Predicated region
    $region2: #{tpu_custom_call.1} parent=1 // pred_check
      _
    $region3: #{tpu_custom_call.1} parent=1 // pred_check_branch
      %15 = sbr.rel (0) target = $region5
    $region4: #{tpu_custom_call.1} parent=1 // pred_region
      %17 = vsyncadd [#allocation3], 0
      %s19 = sshll.u32 %s0, 4
      %s20 = int_to_ptr.hbm [resolvable:$true] %s19
      %s21 = sshll.u32 [#allocation2], 4
      %s22 = int_to_ptr.vmem [resolvable:$true] %s21
      %24 = dma.hbm_to_vmem [thread:$0]  %s20, 128, %s22, [#allocation3]
    $region5: #{tpu_custom_call.1} parent=1 // pred_fallthru
      _
    // Predicated region
    $region6: #{tpu_custom_call.1} parent=1 // pred_check
      _
    $region7: #{tpu_custom_call.1} parent=1 // pred_check_branch
      %26 = sbr.rel (0) target = $region9
    $region8: #{tpu_custom_call.1} parent=1 // pred_region
      %28 = vsyncadd [#allocation5], 0
      %s29 = sshll.u32 %s1, 4
      %s30 = int_to_ptr.hbm [resolvable:$true] %s29
      %s31 = sshll.u32 [#allocation4], 4
      %s32 = int_to_ptr.vmem [resolvable:$true] %s31
      %37 = dma.hbm_to_vmem [thread:$0]  %s30, 512, %s32, [#allocation5], 128, 128, 8
    $region9: #{tpu_custom_call.1} parent=1 // pred_fallthru
      _
    // Predicated region
    $region10: #{tpu_custom_call.1} parent=1 // pred_check
      _
    $region11: #{tpu_custom_call.1} parent=1 // pred_check_branch
      %39 = sbr.rel (0) target = $region13
    $region12: #{tpu_custom_call.1} parent=1 // pred_region
      %41 = vsyncadd [#allocation5], 0
      %s42 = sshll.u32 %s2, 4
      %s43 = int_to_ptr.hbm [resolvable:$true] %s42
      %s44 = sshll.u32 [#allocation6], 4
      %s45 = int_to_ptr.vmem [resolvable:$true] %s44
      %50 = dma.hbm_to_vmem [thread:$0]  %s43, 2048, %s45, [#allocation5], 64, 64, 4
    $region13: #{tpu_custom_call.1} parent=1 // pred_fallthru
      _
    // Predicated region
    $region14: #{tpu_custom_call.1} parent=1 // pred_check
      _
    $region15: #{tpu_custom_call.1} parent=1 // pred_check_branch
      %52 = sbr.rel (0) target = $region17
    $region16: #{tpu_custom_call.1} parent=1 // pred_region
      _
    $region17: #{tpu_custom_call.1} parent=1 // pred_fallthru
      _
    // Predicated region
    $region18: #{tpu_custom_call.1} parent=1 // pred_check
      _
    $region19: #{tpu_custom_call.1} parent=1 // pred_check_branch
      %54 = sbr.rel (0) target = $region21
    $region20: #{tpu_custom_call.1} parent=1 // pred_region
      _
    $region21: #{tpu_custom_call.1} parent=1 // pred_fallthru
      _
    // Predicated region
    $region22: #{tpu_custom_call.1} parent=1 // pred_check
      _
    $region23: #{tpu_custom_call.1} parent=1 // pred_check_branch
      %56 = sbr.rel (0) target = $region25
    $region24: #{tpu_custom_call.1} parent=1 // pred_region
      %58 = vsyncadd [#allocation8], 0
      %s60 = sshll.u32 %s5, 4
      %s61 = int_to_ptr.hbm [resolvable:$true] %s60
      %s62 = sshll.u32 [#allocation7], 4
      %s63 = int_to_ptr.vmem [resolvable:$true] %s62
      %65 = dma.hbm_to_vmem [thread:$0]  %s61, 256, %s63, [#allocation8]
    $region25: #{tpu_custom_call.1} parent=1 // pred_fallthru
      _
    // Predicated region
    $region26: #{tpu_custom_call.1} parent=1 // pred_check
      _
    $region27: #{tpu_custom_call.1} parent=1 // pred_check_branch
      %67 = sbr.rel (0) target = $region29
    $region28: #{tpu_custom_call.1} parent=1 // pred_region
      %69 = dma.done [#allocation3], 128
    $region29: #{tpu_custom_call.1} parent=1 // pred_fallthru
      _
    // Predicated region
    $region30: #{tpu_custom_call.1} parent=1 // pred_check
      _
    $region31: #{tpu_custom_call.1} parent=1 // pred_check_branch
      %71 = sbr.rel (0) target = $region33
    $region32: #{tpu_custom_call.1} parent=1 // pred_region
      %73 = dma.done [#allocation5], 512
    $region33: #{tpu_custom_call.1} parent=1 // pred_fallthru
      _
    // Predicated region
    $region34: #{tpu_custom_call.1} parent=1 // pred_check
      _
    $region35: #{tpu_custom_call.1} parent=1 // pred_check_branch
      %75 = sbr.rel (0) target = $region37
    $region36: #{tpu_custom_call.1} parent=1 // pred_region
      %77 = dma.done [#allocation5], 2048
    $region37: #{tpu_custom_call.1} parent=1 // pred_fallthru
      _
    // Predicated region
    $region38: #{tpu_custom_call.1} parent=1 // pred_check
      _
    $region39: #{tpu_custom_call.1} parent=1 // pred_check_branch
      %79 = sbr.rel (0) target = $region41
    $region40: #{tpu_custom_call.1} parent=1 // pred_region
      %81 = dma.done [#allocation8], 256
    $region41: #{tpu_custom_call.1} parent=1 // pred_fallthru
      _
    %v83 = vld [vmem:[#allocation2] sm:$0xff]
    %v84 = vpack.c.bf16 %v83, %v83
    %v85 = vld [vmem:[#allocation7] ss:$8 sm:$0x3]
    %s86 = scalar_lea.vmem [#allocation7], 1
    %v87 = vld [vmem:[%s86] ss:$8 sm:$0x3]
    %s88 = scalar_lea.vmem [#allocation7], 2
    %v89 = vld [vmem:[%s88] ss:$8 sm:$0x3]
    %v90 = vld [vmem:[#allocation7 + $0x3] ss:$0 sm:$0xff]
    %v91 = vld [vmem:[#allocation7 + $0x4] ss:$0 sm:$0xff]
    %v92 = vld [vmem:[#allocation7 + $0x5] ss:$0 sm:$0xff]
    %v93 = vld [vmem:[#allocation7 + $0x6] ss:$0 sm:$0xff]
    %v94 = vld [vmem:[#allocation7 + $0x7] ss:$0 sm:$0xff]
    %v95 = vld [vmem:[#allocation4] sm:$0xff]
    %v96 = vld [vmem:[#allocation4 + $0x8] sm:$0xff]
    %v97 = vld [vmem:[#allocation4 + $0x10] sm:$0xff]
    %v98 = vld [vmem:[#allocation4 + $0x18] sm:$0xff]
    %v100 = vperm.slane %v85, 0
    %v101 = vperm.slane %v85, 1
    %v108 = vunpack.c.l.b16 %v95
    %v109 = vunpack.c.h.b16 %v95
    %v110 = vunpack.c.l.b16 %v96
    %v111 = vunpack.c.h.b16 %v96
    %v112 = vunpack.c.l.b16 %v97
    %v113 = vunpack.c.h.b16 %v97
    %v114 = vunpack.c.l.b16 %v98
    %v115 = vunpack.c.h.b16 %v98
    %v116 = vpack.c.b16 %v110, %v108
    %v117 = vpack.c.b16 %v111, %v109
    %v118 = vpack.c.b16 %v114, %v112
    %v119 = vpack.c.b16 %v115, %v113
    %vm124 = vcmask 261120
    %v126 = vsel %vm124, %v84, 0
    %128 = vmatpush.bf16.msra.mxu0 0
    %129 = vmatpush.bf16.msra.mxu0 0
    %130 = vmatpush.bf16.msra.mxu0 0
    %131 = vmatpush.bf16.msra.mxu0 0
    %132 = vmatpush.bf16.msra.mxu0 0
    %133 = vmatpush.bf16.msra.mxu0 0
    %134 = vmatpush.bf16.msra.mxu0 %v118
    %135 = vmatpush.bf16.msra.mxu0 %v116
    %136 = vmatmul.bf16.gmra.mxu0 %v126
    %v137 = vpop.f32.mrf.mxu0
    %v138 = vadd.f32 %v100, %v137
    %v139 = vpop.f32.mrf.mxu0
    %140 = vdwg.mxu0
    %141 = vmatpush.bf16.msra.mxu0 0
    %142 = vmatpush.bf16.msra.mxu0 0
    %143 = vmatpush.bf16.msra.mxu0 0
    %144 = vmatpush.bf16.msra.mxu0 0
    %145 = vmatpush.bf16.msra.mxu0 0
    %146 = vmatpush.bf16.msra.mxu0 0
    %147 = vmatpush.bf16.msra.mxu0 %v119
    %148 = vmatpush.bf16.msra.mxu0 %v117
    %149 = vmatmul.bf16.gmra.mxu0 %v126
    %v150 = vpop.f32.mrf.mxu0
    %v151 = vadd.f32 %v101, %v150
    %v152 = vpop.f32.mrf.mxu0
    %153 = vdwg.mxu0
    %v154 = vmax.f32 %v138, 0.0
    %v155 = vmax.f32 %v151, 0.0
    %v156 = vadd.f32 %v154, %v155
    %157 = vadd.xlane.f32.xlu0 %v156
    %v158 = vpop.xlane.xlu0 %157
    %v159 = vmul.f32 %v154, %v154
    %v160 = vmul.f32 %v155, %v155
    %v161 = vadd.f32 %v159, %v160
    %162 = vadd.xlane.f32.xlu0 %v161
    %v163 = vpop.xlane.xlu0 %162
    %v164 = vmul.f32 %v158, 0.00390625
    %v165 = vmul.f32 %v163, 0.00390625
    %v166 = vmul.f32 %v164, %v164
    %v167 = vsub.f32 %v165, %v166
    %v168 = vmax.f32 %v167, 0.0
    %v169 = vadd.f32 %v168, 1e-05
    %v170 = vrsqrt.pop %v169
    %v171 = vmul.f32 %v170, %v169
    %v172 = vmul.f32 %v171, %v170
    %v173 = vmul.f32 0.5, %v172
    %v174 = vsub.f32 1.5, %v173
    %v175 = vmul.f32 %v170, %v174
    %vm176 = vweird.f32 %v169
    %vm177 = vweird.f32 %v170
    %vm178 = vmor %vm176, %vm177
    %v179 = vsel %vm178, %v170, %v175
    %v180 = vsub.f32 %v154, %v164
    %v181 = vsub.f32 %v155, %v164
    %v182 = vmul.f32 %v180, %v179
    %v183 = vmul.f32 %v181, %v179
    %v185 = vperm.slane %v87, 0
    %v186 = vperm.slane %v87, 1
    %v189 = vmul.f32 %v182, %v185
    %v190 = vmul.f32 %v183, %v186
    %v192 = vperm.slane %v89, 0
    %v193 = vperm.slane %v89, 1
    %v196 = vadd.f32 %v189, %v192
    %v197 = vadd.f32 %v190, %v193
    %v198 = vpack.c.bf16 %v196, %v196
    %v199 = vpack.c.bf16 %v197, %v197
    %v200 = vld [vmem:[#allocation6] sm:$0xf]
    %v201 = vld [vmem:[#allocation6 + $0x4] sm:$0xf]
    %v202 = vld [vmem:[#allocation6 + $0x8] sm:$0xf]
    %v203 = vld [vmem:[#allocation6 + $0xc] sm:$0xf]
    %v204 = vld [vmem:[#allocation6 + $0x10] sm:$0xf]
    %v205 = vld [vmem:[#allocation6 + $0x14] sm:$0xf]
    %v206 = vld [vmem:[#allocation6 + $0x18] sm:$0xf]
    %v207 = vld [vmem:[#allocation6 + $0x1c] sm:$0xf]
    %v208 = vld [vmem:[#allocation6 + $0x20] sm:$0xf]
    %v209 = vld [vmem:[#allocation6 + $0x24] sm:$0xf]
    %v210 = vld [vmem:[#allocation6 + $0x28] sm:$0xf]
    %v211 = vld [vmem:[#allocation6 + $0x2c] sm:$0xf]
    %v212 = vld [vmem:[#allocation6 + $0x30] sm:$0xf]
    %v213 = vld [vmem:[#allocation6 + $0x34] sm:$0xf]
    %v214 = vld [vmem:[#allocation6 + $0x38] sm:$0xf]
    %v215 = vld [vmem:[#allocation6 + $0x3c] sm:$0xf]
    %v216 = vld [vmem:[#allocation6 + $0x40] sm:$0xf]
    %v217 = vld [vmem:[#allocation6 + $0x44] sm:$0xf]
    %v218 = vld [vmem:[#allocation6 + $0x48] sm:$0xf]
    %v219 = vld [vmem:[#allocation6 + $0x4c] sm:$0xf]
    %v220 = vld [vmem:[#allocation6 + $0x50] sm:$0xf]
    %v221 = vld [vmem:[#allocation6 + $0x54] sm:$0xf]
    %v222 = vld [vmem:[#allocation6 + $0x58] sm:$0xf]
    %v223 = vld [vmem:[#allocation6 + $0x5c] sm:$0xf]
    %v224 = vld [vmem:[#allocation6 + $0x60] sm:$0xf]
    %v225 = vld [vmem:[#allocation6 + $0x64] sm:$0xf]
    %v226 = vld [vmem:[#allocation6 + $0x68] sm:$0xf]
    %v227 = vld [vmem:[#allocation6 + $0x6c] sm:$0xf]
    %v228 = vld [vmem:[#allocation6 + $0x70] sm:$0xf]
    %v229 = vld [vmem:[#allocation6 + $0x74] sm:$0xf]
    %v230 = vld [vmem:[#allocation6 + $0x78] sm:$0xf]
    %v231 = vld [vmem:[#allocation6 + $0x7c] sm:$0xf]
    %v264 = vunpack.c.l.b16 %v200
    %v265 = vunpack.c.l.b16 %v201
    %v266 = vunpack.c.l.b16 %v202
    %v267 = vunpack.c.l.b16 %v203
    %v268 = vunpack.c.l.b16 %v204
    %v269 = vunpack.c.l.b16 %v205
    %v270 = vunpack.c.l.b16 %v206
    %v271 = vunpack.c.l.b16 %v207
    %v272 = vunpack.c.l.b16 %v208
    %v273 = vunpack.c.l.b16 %v209
    %v274 = vunpack.c.l.b16 %v210
    %v275 = vunpack.c.l.b16 %v211
    %v276 = vunpack.c.l.b16 %v212
    %v277 = vunpack.c.l.b16 %v213
    %v278 = vunpack.c.l.b16 %v214
    %v279 = vunpack.c.l.b16 %v215
    %v280 = vunpack.c.l.b16 %v216
    %v281 = vunpack.c.l.b16 %v217
    %v282 = vunpack.c.l.b16 %v218
    %v283 = vunpack.c.l.b16 %v219
    %v284 = vunpack.c.l.b16 %v220
    %v285 = vunpack.c.l.b16 %v221
    %v286 = vunpack.c.l.b16 %v222
    %v287 = vunpack.c.l.b16 %v223
    %v288 = vunpack.c.l.b16 %v224
    %v289 = vunpack.c.l.b16 %v225
    %v290 = vunpack.c.l.b16 %v226
    %v291 = vunpack.c.l.b16 %v227
    %v292 = vunpack.c.l.b16 %v228
    %v293 = vunpack.c.l.b16 %v229
    %v294 = vunpack.c.l.b16 %v230
    %v295 = vunpack.c.l.b16 %v231
    %v296 = vpack.c.b16 %v265, %v264
    %v297 = vpack.c.b16 %v267, %v266
    %v298 = vpack.c.b16 %v269, %v268
    %v299 = vpack.c.b16 %v271, %v270
    %v300 = vpack.c.b16 %v273, %v272
    %v301 = vpack.c.b16 %v275, %v274
    %v302 = vpack.c.b16 %v277, %v276
    %v303 = vpack.c.b16 %v279, %v278
    %v304 = vpack.c.b16 %v281, %v280
    %v305 = vpack.c.b16 %v283, %v282
    %v306 = vpack.c.b16 %v285, %v284
    %v307 = vpack.c.b16 %v287, %v286
    %v308 = vpack.c.b16 %v289, %v288
    %v309 = vpack.c.b16 %v291, %v290
    %v310 = vpack.c.b16 %v293, %v292
    %v311 = vpack.c.b16 %v295, %v294
    %328 = vmatpush.bf16.msra.mxu0 %v303
    %329 = vmatpush.bf16.msra.mxu0 %v302
    %330 = vmatpush.bf16.msra.mxu0 %v301
    %331 = vmatpush.bf16.msra.mxu0 %v300
    %332 = vmatpush.bf16.msra.mxu0 %v299
    %333 = vmatpush.bf16.msra.mxu0 %v298
    %334 = vmatpush.bf16.msra.mxu0 %v297
    %335 = vmatpush.bf16.msra.mxu0 %v296
    %336 = vmatmul.bf16.gmra.mxu0 %v198
    %v337 = vpop.f32.mrf.mxu0
    %v338 = vadd.f32 %v90, %v337
    %v339 = vpop.f32.mrf.mxu0
    %340 = vdwg.mxu0
    %341 = vmatpush.bf16.msra.mxu0 %v311
    %342 = vmatpush.bf16.msra.mxu0 %v310
    %343 = vmatpush.bf16.msra.mxu0 %v309
    %344 = vmatpush.bf16.msra.mxu0 %v308
    %345 = vmatpush.bf16.msra.mxu0 %v307
    %346 = vmatpush.bf16.msra.mxu0 %v306
    %347 = vmatpush.bf16.msra.mxu0 %v305
    %348 = vmatpush.bf16.msra.mxu0 %v304
    %349 = vmatmul.bf16.gmra.mxu0 %v199
    %v350 = vpop.f32.mrf.mxu0
    %v351 = vadd.f32 %v338, %v350
    %v352 = vpop.f32.mrf.mxu0
    %353 = vdwg.mxu0
    %v354 = vmax.f32 %v351, 0.0
    %355 = vadd.xlane.f32.xlu0 %v354
    %v356 = vpop.xlane.xlu0 %355
    %v357 = vmul.f32 %v354, %v354
    %358 = vadd.xlane.f32.xlu0 %v357
    %v359 = vpop.xlane.xlu0 %358
    %v360 = vmul.f32 %v356, 0.0078125
    %v361 = vmul.f32 %v359, 0.0078125
    %v362 = vmul.f32 %v360, %v360
    %v363 = vsub.f32 %v361, %v362
    %v364 = vmax.f32 %v363, 0.0
    %v365 = vadd.f32 %v364, 1e-05
    %v366 = vrsqrt.pop %v365
    %v367 = vmul.f32 %v366, %v365
    %v368 = vmul.f32 %v367, %v366
    %v369 = vmul.f32 0.5, %v368
    %v370 = vsub.f32 1.5, %v369
    %v371 = vmul.f32 %v366, %v370
    %vm372 = vweird.f32 %v365
    %vm373 = vweird.f32 %v366
    %vm374 = vmor %vm372, %vm373
    %v375 = vsel %vm374, %v366, %v371
    %v376 = vsub.f32 %v354, %v360
    %v377 = vmul.f32 %v376, %v375
    %v378 = vmul.f32 %v377, %v91
    %v379 = vadd.f32 %v378, %v92
    %v380 = vpack.c.bf16 %v379, %v379
    %v381 = vld [vmem:[%s3] sm:$0xf]
    %v382 = vld [vmem:[%s3 + $0x4] sm:$0xf]
    %v383 = vld [vmem:[%s3 + $0x8] sm:$0xf]
    %v384 = vld [vmem:[%s3 + $0xc] sm:$0xf]
    %v385 = vld [vmem:[%s3 + $0x10] sm:$0xf]
    %v386 = vld [vmem:[%s3 + $0x14] sm:$0xf]
    %v387 = vld [vmem:[%s3 + $0x18] sm:$0xf]
    %v388 = vld [vmem:[%s3 + $0x1c] sm:$0xf]
    %v389 = vld [vmem:[%s3 + $0x20] sm:$0xf]
    %v390 = vld [vmem:[%s3 + $0x24] sm:$0xf]
    %v391 = vld [vmem:[%s3 + $0x28] sm:$0xf]
    %v392 = vld [vmem:[%s3 + $0x2c] sm:$0xf]
    %v393 = vld [vmem:[%s3 + $0x30] sm:$0xf]
    %v394 = vld [vmem:[%s3 + $0x34] sm:$0xf]
    %v395 = vld [vmem:[%s3 + $0x38] sm:$0xf]
    %v396 = vld [vmem:[%s3 + $0x3c] sm:$0xf]
    %v413 = vunpack.c.l.b16 %v381
    %v414 = vunpack.c.l.b16 %v382
    %v415 = vunpack.c.l.b16 %v383
    %v416 = vunpack.c.l.b16 %v384
    %v417 = vunpack.c.l.b16 %v385
    %v418 = vunpack.c.l.b16 %v386
    %v419 = vunpack.c.l.b16 %v387
    %v420 = vunpack.c.l.b16 %v388
    %v421 = vunpack.c.l.b16 %v389
    %v422 = vunpack.c.l.b16 %v390
    %v423 = vunpack.c.l.b16 %v391
    %v424 = vunpack.c.l.b16 %v392
    %v425 = vunpack.c.l.b16 %v393
    %v426 = vunpack.c.l.b16 %v394
    %v427 = vunpack.c.l.b16 %v395
    %v428 = vunpack.c.l.b16 %v396
    %v429 = vpack.c.b16 %v414, %v413
    %v430 = vpack.c.b16 %v416, %v415
    %v431 = vpack.c.b16 %v418, %v417
    %v432 = vpack.c.b16 %v420, %v419
    %v433 = vpack.c.b16 %v422, %v421
    %v434 = vpack.c.b16 %v424, %v423
    %v435 = vpack.c.b16 %v426, %v425
    %v436 = vpack.c.b16 %v428, %v427
    %445 = vmatpush.bf16.msra.mxu0 %v436
    %446 = vmatpush.bf16.msra.mxu0 %v435
    %447 = vmatpush.bf16.msra.mxu0 %v434
    %448 = vmatpush.bf16.msra.mxu0 %v433
    %449 = vmatpush.bf16.msra.mxu0 %v432
    %450 = vmatpush.bf16.msra.mxu0 %v431
    %451 = vmatpush.bf16.msra.mxu0 %v430
    %452 = vmatpush.bf16.msra.mxu0 %v429
    %453 = vmatmul.bf16.gmra.mxu0 %v380
    %v454 = vpop.f32.mrf.mxu0
    %v455 = vadd.f32 %v93, %v454
    %v456 = vpop.f32.mrf.mxu0
    %457 = vdwg.mxu0
    %v458 = vmax.f32 %v455, 0.0
    %v459 = vpack.c.bf16 %v458, %v458
    %v460 = vld [vmem:[%s4] sm:$0xf]
    %v461 = vld [vmem:[%s4 + $0x4] sm:$0xf]
    %v462 = vld [vmem:[%s4 + $0x8] sm:$0xf]
    %v463 = vld [vmem:[%s4 + $0xc] sm:$0xf]
    %v464 = vld [vmem:[%s4 + $0x10] sm:$0xf]
    %v465 = vld [vmem:[%s4 + $0x14] sm:$0xf]
    %v466 = vld [vmem:[%s4 + $0x18] sm:$0xf]
    %v467 = vld [vmem:[%s4 + $0x1c] sm:$0xf]
    %v468 = vld [vmem:[%s4 + $0x20] sm:$0xf]
    %v469 = vld [vmem:[%s4 + $0x24] sm:$0xf]
    %v470 = vld [vmem:[%s4 + $0x28] sm:$0xf]
    %v471 = vld [vmem:[%s4 + $0x2c] sm:$0xf]
    %v472 = vld [vmem:[%s4 + $0x30] sm:$0xf]
    %v473 = vld [vmem:[%s4 + $0x34] sm:$0xf]
    %v474 = vld [vmem:[%s4 + $0x38] sm:$0xf]
    %v475 = vld [vmem:[%s4 + $0x3c] sm:$0xf]
    %v492 = vunpack.c.l.b16 %v460
    %v493 = vunpack.c.l.b16 %v461
    %v494 = vunpack.c.l.b16 %v462
    %v495 = vunpack.c.l.b16 %v463
    %v496 = vunpack.c.l.b16 %v464
    %v497 = vunpack.c.l.b16 %v465
    %v498 = vunpack.c.l.b16 %v466
    %v499 = vunpack.c.l.b16 %v467
    %v500 = vunpack.c.l.b16 %v468
    %v501 = vunpack.c.l.b16 %v469
    %v502 = vunpack.c.l.b16 %v470
    %v503 = vunpack.c.l.b16 %v471
    %v504 = vunpack.c.l.b16 %v472
    %v505 = vunpack.c.l.b16 %v473
    %v506 = vunpack.c.l.b16 %v474
    %v507 = vunpack.c.l.b16 %v475
    %v508 = vpack.c.b16 %v493, %v492
    %v509 = vpack.c.b16 %v495, %v494
    %v510 = vpack.c.b16 %v497, %v496
    %v511 = vpack.c.b16 %v499, %v498
    %v512 = vpack.c.b16 %v501, %v500
    %v513 = vpack.c.b16 %v503, %v502
    %v514 = vpack.c.b16 %v505, %v504
    %v515 = vpack.c.b16 %v507, %v506
    %524 = vmatpush.bf16.msra.mxu0 %v515
    %525 = vmatpush.bf16.msra.mxu0 %v514
    %526 = vmatpush.bf16.msra.mxu0 %v513
    %527 = vmatpush.bf16.msra.mxu0 %v512
    %528 = vmatpush.bf16.msra.mxu0 %v511
    %529 = vmatpush.bf16.msra.mxu0 %v510
    %530 = vmatpush.bf16.msra.mxu0 %v509
    %531 = vmatpush.bf16.msra.mxu0 %v508
    %532 = vmatmul.bf16.gmra.mxu0 %v459
    %v533 = vpop.f32.mrf.mxu0
    %v534 = vadd.f32 %v94, %v533
    %v535 = vpop.f32.mrf.mxu0
    %536 = vdwg.mxu0
    %vm537 = vcmask 31744
    %538 = vst.msk [vmem:[%s6] sm:$0xff] %vm537, %v534
    // Predicated region
    $region42: #{tpu_custom_call.1} parent=1 // pred_check
      _
    $region43: #{tpu_custom_call.1} parent=1 // pred_check_branch
      %540 = sbr.rel (0) target = $region45
    $region44: #{tpu_custom_call.1} parent=1 // pred_region
      _
    $region45: #{tpu_custom_call.1} parent=1 // pred_fallthru
      _
    // Predicated region
    $region46: #{tpu_custom_call.1} parent=1 // pred_check
      _
    $region47: #{tpu_custom_call.1} parent=1 // pred_check_branch
      %542 = sbr.rel (0) target = $region49
    $region48: #{tpu_custom_call.1} parent=1 // pred_region
      _
    $region49: #{tpu_custom_call.1} parent=1 // pred_fallthru
      _
    %543 = vsyncpa [#allocation3], 1
    %544 = vsyncpa [#allocation5], 1
    %545 = vsyncpa [#allocation8], 1

</llo_original>
